<compile_context>
chip_gen: v7x
topology: tpu7x:2x2x1
jax: 0.10.0
libtpu: 0.0.40
codegen_flags: <defaults>
</compile_context>

<pallas_src>
import functools
import math

import jax
import jax.numpy as jnp
from jax.experimental import pallas as pl
from jax.experimental.pallas import tpu as pltpu

PART = 6
BN_EPS = 1e-5


def _round_up(x, m):
    return (x + m - 1) // m * m


def _pick_row_chunk(rows):
    """Row-chunk for the f32 pooling accumulation (cap at 8 sublane rows)."""
    for c in (8, 4, 2, 1):
        if rows % c == 0:
            return c
    return 1


def _pick_batch_tile(n, rows, c, b, kp, x_itemsize, feat_itemsize,
                     logit_itemsize, row_chunk):
    """Largest batch tile whose per-step VMEM footprint fits the budget.

    Budget is derived from the actual generation VMEM (v5e/v6e: 128 MiB,
    v7x: 64 MiB per TensorCore) with headroom for compiler scratch.
    Returns (tn, vmem_limit_bytes).
    """
    try:
        vmem_cap = int(pltpu.get_tpu_info().vmem_capacity_bytes)
    except Exception:  # pragma: no cover - conservative fallback
        vmem_cap = 64 * 1024 * 1024
    budget = int(vmem_cap * 0.70)
    # v7x (64 MiB / TC): cap the batch tile; v5e/v6e: allow up to 256.
    tn_cap = 64 if vmem_cap <= 64 * 1024 * 1024 else 256

    # Double-buffered weights (bf16) + biases (f32); fetched once per part.
    w_bytes = 2 * (c * b + b * kp) * 2 + 2 * (b + kp) * 4

    def footprint(tn):
        return (2 * tn * rows * c * x_itemsize      # x stripe, double-buffered
                + tn * row_chunk * c * 4            # f32 chunk temporary
                + tn * c * 4                        # f32 pooled accumulator
                + 2 * tn * c * feat_itemsize        # feature out, double-buffered
                + 2 * tn * kp * logit_itemsize      # logits out, double-buffered
                + w_bytes)

    for tn in (256, 128, 64, 32, 16, 8):
        if tn > tn_cap or n % tn != 0:
            continue
        if footprint(tn) <= budget:
            return tn, budget
    # Fallback: smallest sane tile (or the whole batch when N is tiny/odd).
    tn = 8 if n % 8 == 0 else n
    return tn, budget


def _pcb_part_kernel(x_ref, w1_ref, b1_ref, w2_ref, b2_ref,
                     feat_ref, logit_ref, *, row_chunk, n_chunks, inv_rows):
    # x_ref: (tn, rows, C) — this part's spatial stripe for this batch tile.
    tn = x_ref.shape[0]
    c = x_ref.shape[2]

    # AdaptiveAvgPool2d((6, 1)): f32 sum accumulated over small row chunks so
    # the full block is never materialized in f32.
    def add_chunk(i, acc):
        r0 = pl.multiple_of(i * row_chunk, row_chunk)
        blk = x_ref[:, pl.ds(r0, row_chunk), :].astype(jnp.float32)
        return acc + jnp.sum(blk, axis=1)

    if n_chunks == 1:
        acc = jnp.sum(x_ref[...].astype(jnp.float32), axis=1)
    else:
        acc = jax.lax.fori_loop(0, n_chunks, add_chunk,
                                jnp.zeros((tn, c), jnp.float32), unroll=True)
    pooled = acc * inv_rows                             # (tn, C) f32
    # Dropout(p=0.5) in eval mode == identity.
    feat_ref[...] = pooled.astype(feat_ref.dtype)

    # add_block Linear with eval-mode BatchNorm1d pre-folded into w1 / b1.
    h = jnp.dot(pooled.astype(w1_ref.dtype), w1_ref[...],
                preferred_element_type=jnp.float32) + b1_ref[...]  # (tn, B) f32
    # relu=False -> no LeakyReLU; Dropout eval -> identity.

    # classifier Linear (num_classes padded to a lane multiple; sliced outside).
    logits = jnp.dot(h.astype(w2_ref.dtype), w2_ref[...],
                     preferred_element_type=jnp.float32) + b2_ref[...]
    logit_ref[...] = logits.astype(logit_ref.dtype)


def pcb_head(x_nhwc, prep, *, feature_dtype=None, logit_dtype=None):
    """PCB head on the backbone feature map laid out NHWC (N, H, W, C).

    Returns (predict, feature) stacked on a leading `part` axis:
      predict: (PART, N, num_classes)  == torch's list of 6 (N, K) logits
      feature: (PART, N, C)            == torch's list of 6 (N, C) pooled feats

    Outputs default to the input dtype (bf16) to halve store bandwidth in this
    HBM-bound kernel; pass feature_dtype/logit_dtype=jnp.float32 for strict
    f32 parity with the torch reference.
    """
    N, H, W, C = x_nhwc.shape
    assert H % PART == 0, "adaptive pool to 6 stripes needs H divisible by 6"
    hp = H // PART
    rows = hp * W

    w1, b1, w2, b2 = prep["w1"], prep["b1"], prep["w2"], prep["b2"]
    K = prep["num_classes"]
    B = w1.shape[-1]
    Kp = w2.shape[-1]

    feature_dtype = x_nhwc.dtype if feature_dtype is None else feature_dtype
    logit_dtype = x_nhwc.dtype if logit_dtype is None else logit_dtype
    feat_isz = jnp.dtype(feature_dtype).itemsize
    logit_isz = jnp.dtype(logit_dtype).itemsize

    # Free relayout (contiguous NHWC): split H into (PART, hp) and merge
    # (hp, W) into a single lane-friendly `rows` axis per part.
    x_parts = x_nhwc.reshape(N, PART, rows, C)

    row_chunk = _pick_row_chunk(rows)
    n_chunks = rows // row_chunk

    tn, vmem_limit = _pick_batch_tile(N, rows, C, B, Kp,
                                      x_nhwc.dtype.itemsize, feat_isz,
                                      logit_isz, row_chunk)
    n_tiles = N // tn

    kernel = functools.partial(_pcb_part_kernel, row_chunk=row_chunk,
                               n_chunks=n_chunks, inv_rows=1.0 / rows)

    # Bandwidth-heavy op: give XLA's scheduler an honest cost hint.
    flops = 2 * N * PART * (C * B + B * Kp) + N * H * W * C
    bytes_accessed = (x_nhwc.size * x_nhwc.dtype.itemsize
                      + w1.size * w1.dtype.itemsize
                      + b1.size * b1.dtype.itemsize
                      + w2.size * w2.dtype.itemsize
                      + b2.size * b2.dtype.itemsize
                      + PART * N * C * feat_isz
                      + PART * N * Kp * logit_isz)

    feat, logits = pl.pallas_call(
        kernel,
        out_shape=(
            jax.ShapeDtypeStruct((PART, N, C), feature_dtype),
            jax.ShapeDtypeStruct((PART, N, Kp), logit_dtype),
        ),
        grid_spec=pltpu.PrefetchScalarGridSpec(
            num_scalar_prefetch=0,
            grid=(PART, n_tiles),      # batch innermost -> weights not re-fetched
            in_specs=[
                # Part stripe sliced straight out of the (N, PART, rows, C) view.
                pl.BlockSpec((tn, pl.Squeezed(), rows, C),
                             lambda p, n: (n, p, 0, 0)),
                pl.BlockSpec((pl.Squeezed(), C, B), lambda p, n: (p, 0, 0)),   # w1
                pl.BlockSpec((pl.Squeezed(), 1, B), lambda p, n: (p, 0, 0)),   # b1
                pl.BlockSpec((pl.Squeezed(), B, Kp), lambda p, n: (p, 0, 0)),  # w2
                pl.BlockSpec((pl.Squeezed(), 1, Kp), lambda p, n: (p, 0, 0)),  # b2
            ],
            out_specs=[
                pl.BlockSpec((pl.Squeezed(), tn, C), lambda p, n: (p, n, 0)),
                pl.BlockSpec((pl.Squeezed(), tn, Kp), lambda p, n: (p, n, 0)),
            ],
        ),
        compiler_params=pltpu.CompilerParams(
            dimension_semantics=("parallel", "parallel"),
            vmem_limit_bytes=int(vmem_limit)),
        cost_estimate=pl.CostEstimate(flops=int(flops), transcendentals=0,
                                      bytes_accessed=int(bytes_accessed)),
    )(x_parts, w1, b1, w2, b2)

    if Kp != K:
        logits = logits[:, :, :K]
    return logits, feat


def init_pcb_params(key, input_dim, num_bottleneck, num_classes):
    """Raw f32 params matching the torch init semantics (shapes / distros).

    - add_block Linear: kaiming_normal_ (a=0, mode='fan_out') -> std=sqrt(2/out)
      (weight stored transposed as (C, B) for direct matmul), bias = 0
    - BatchNorm1d: weight ~ N(1.0, 0.02), bias = 0, running_mean=0, running_var=1
    - classifier Linear: weight ~ N(0, 0.001), bias = 0
    """
    C, B, K = input_dim, num_bottleneck, num_classes
    k1, k2, k3 = jax.random.split(key, 3)
    w1 = jax.random.normal(k1, (PART, C, B), jnp.float32) * math.sqrt(2.0 / B)
    b1 = jnp.zeros((PART, 1, B), jnp.float32)
    gamma = 1.0 + 0.02 * jax.random.normal(k2, (PART, 1, B), jnp.float32)
    beta = jnp.zeros((PART, 1, B), jnp.float32)
    rmean = jnp.zeros((PART, 1, B), jnp.float32)
    rvar = jnp.ones((PART, 1, B), jnp.float32)
    w2 = jax.random.normal(k3, (PART, B, K), jnp.float32) * 0.001
    b2 = jnp.zeros((PART, 1, K), jnp.float32)
    return dict(w1=w1, b1=b1, gamma=gamma, beta=beta,
                rmean=rmean, rvar=rvar, w2=w2, b2=b2)


def prepare_pcb_params(raw, compute_dtype=jnp.bfloat16):
    """Fold eval-mode BN into the first Linear, cast weights, pad num_classes."""
    scale = raw["gamma"] * jax.lax.rsqrt(raw["rvar"] + BN_EPS)     # (PART,1,B)
    w1 = raw["w1"] * scale
    b1 = (raw["b1"] - raw["rmean"]) * scale + raw["beta"]
    K = raw["w2"].shape[-1]
    Kp = _round_up(K, 128)
    w2 = jnp.pad(raw["w2"], ((0, 0), (0, 0), (0, Kp - K)))
    b2 = jnp.pad(raw["b2"], ((0, 0), (0, 0), (0, Kp - K)))
    return dict(w1=w1.astype(compute_dtype), b1=b1.astype(jnp.float32),
                w2=w2.astype(compute_dtype), b2=b2.astype(jnp.float32),
                num_classes=K)


def _reference(x_nhwc, prep):
    """Pure-JAX f32 reference with the same BN-folded weights."""
    N, H, W, C = x_nhwc.shape
    hp = H // PART
    x = x_nhwc.astype(jnp.float32).reshape(N, PART, hp * W, C)
    pooled = jnp.mean(x, axis=2)                                   # (N, PART, C)
    pooled = jnp.transpose(pooled, (1, 0, 2))                      # (PART, N, C)
    w1 = prep["w1"].astype(jnp.float32)
    w2 = prep["w2"].astype(jnp.float32)
    h = jnp.einsum("pnc,pcb->pnb", pooled, w1) + prep["b1"]
    logits = jnp.einsum("pnb,pbk->pnk", h, w2) + prep["b2"]
    return logits[:, :, :prep["num_classes"]], pooled


if __name__ == "__main__":
    # Small shapes standing in for the real ones
    # (real: C=2048, bottleneck=256, H=24, W=8 for 384x128 inputs, K≈751).
    N, C, H, W = 8, 256, 12, 4
    NUM_BOTTLENECK = 128
    NUM_CLASSES = 32

    key = jax.random.PRNGKey(0)
    kx, kp = jax.random.split(key)
    # Backbone (ResNet-50 layer4) output feature map, emitted NHWC / bf16.
    x = jax.random.normal(kx, (N, H, W, C), jnp.float32).astype(jnp.bfloat16)

    raw = init_pcb_params(kp, C, NUM_BOTTLENECK, NUM_CLASSES)
    prep = prepare_pcb_params(raw)

    predict, feature = pcb_head(x, prep)
    jax.block_until_ready(predict)
    jax.block_until_ready(feature)

    assert predict.shape == (PART, N, NUM_CLASSES)
    assert feature.shape == (PART, N, C)

    # Loose-tolerance parity check vs. a pure-JAX f32 reference (outputs are
    # deliberately emitted in bf16).
    ref_logits, ref_feat = _reference(x, prep)
    assert jnp.allclose(feature.astype(jnp.float32), ref_feat,
                        atol=2e-2, rtol=2e-2)
    assert jnp.allclose(predict.astype(jnp.float32), ref_logits,
                        atol=2e-2, rtol=2e-2)

    print("KERNEL_OK")
</pallas_src>

<mosaic_0001>
module attributes {stable_mosaic.version = 11 : i64} {
  func.func @_pcb_part_kernel(%arg0: i32, %arg1: i32, %arg2: memref<8x1x8x256xbf16, #tpu.memory_space<vmem>>, %arg3: memref<1x256x128xbf16, #tpu.memory_space<vmem>>, %arg4: memref<1x1x128xf32, #tpu.memory_space<vmem>>, %arg5: memref<1x128x128xbf16, #tpu.memory_space<vmem>>, %arg6: memref<1x1x128xf32, #tpu.memory_space<vmem>>, %arg7: memref<1x8x256xbf16, #tpu.memory_space<vmem>>, %arg8: memref<1x8x128xbf16, #tpu.memory_space<vmem>>) attributes {dimension_semantics = [#tpu.dimension_semantics<parallel>, #tpu.dimension_semantics<parallel>], iteration_bounds = array<i64: 6, 1>, scalar_prefetch = 0 : i64, scratch_operands = 0 : i64, tpu.core_type = #tpu.core_type<tc>, window_params = [{transform_indices = @transform_0, window_bounds = array<i64: 8, 1, 8, 256>}, {transform_indices = @transform_1, window_bounds = array<i64: 1, 256, 128>}, {transform_indices = @transform_2, window_bounds = array<i64: 1, 1, 128>}, {transform_indices = @transform_3, window_bounds = array<i64: 1, 128, 128>}, {transform_indices = @transform_4, window_bounds = array<i64: 1, 1, 128>}, {transform_indices = @transform_5, window_bounds = array<i64: 1, 8, 256>}, {transform_indices = @transform_6, window_bounds = array<i64: 1, 8, 128>}]} {
    %c0 = arith.constant 0 : index
    %c0_0 = arith.constant 0 : index
    %c0_1 = arith.constant 0 : index
    %c0_2 = arith.constant 0 : index
    %0 = vector.load %arg2[%c0, %c0_0, %c0_1, %c0_2] : memref<8x1x8x256xbf16, #tpu.memory_space<vmem>>, vector<8x1x8x256xbf16>
    %1 = vector.shape_cast %0 : vector<8x1x8x256xbf16> to vector<8x8x256xbf16>
    %2 = arith.extf %1 : vector<8x8x256xbf16> to vector<8x8x256xf32>
    %cst = arith.constant dense<0.000000e+00> : vector<8x256xf32>
    %3 = vector.multi_reduction <add>, %2, %cst [1] : vector<8x8x256xf32> to vector<8x256xf32>
    %cst_3 = arith.constant 1.250000e-01 : f32
    %4 = vector.broadcast %cst_3 : f32 to vector<8x256xf32>
    %5 = arith.mulf %3, %4 : vector<8x256xf32>
    %6 = arith.truncf %5 : vector<8x256xf32> to vector<8x256xbf16>
    %c0_4 = arith.constant 0 : index
    %c0_5 = arith.constant 0 : index
    %c0_6 = arith.constant 0 : index
    %7 = vector.load %arg7[%c0_4, %c0_5, %c0_6] : memref<1x8x256xbf16, #tpu.memory_space<vmem>>, vector<1x8x256xbf16>
    %8 = vector.shape_cast %7 : vector<1x8x256xbf16> to vector<8x256xbf16>
    %9 = vector.shape_cast %6 : vector<8x256xbf16> to vector<1x8x256xbf16>
    tpu.vector_store %arg7[%c0_4, %c0_5, %c0_6], %9 {strides = array<i32>} : memref<1x8x256xbf16, #tpu.memory_space<vmem>>, vector<1x8x256xbf16>,
    %10 = arith.truncf %5 : vector<8x256xf32> to vector<8x256xbf16>
    %c0_7 = arith.constant 0 : index
    %c0_8 = arith.constant 0 : index
    %c0_9 = arith.constant 0 : index
    %11 = vector.load %arg3[%c0_7, %c0_8, %c0_9] : memref<1x256x128xbf16, #tpu.memory_space<vmem>>, vector<1x256x128xbf16>
    %12 = vector.shape_cast %11 : vector<1x256x128xbf16> to vector<256x128xbf16>
    %cst_10 = arith.constant dense<0.000000e+00> : vector<8x128xf32>
    %13 = tpu.matmul %10, %12, %cst_10 {dimension_numbers = #tpu.dot_dimension_numbers<[1], [0], [0], [1], [0, 0, 1, 1], [], []>} : vector<8x256xbf16>, vector<256x128xbf16>, vector<8x128xf32> -> vector<8x128xf32>
    %c0_11 = arith.constant 0 : index
    %c0_12 = arith.constant 0 : index
    %c0_13 = arith.constant 0 : index
    %14 = vector.load %arg4[%c0_11, %c0_12, %c0_13] : memref<1x1x128xf32, #tpu.memory_space<vmem>>, vector<1x1x128xf32>
    %15 = vector.shape_cast %14 : vector<1x1x128xf32> to vector<1x128xf32>
    %16 = vector.broadcast %15 : vector<1x128xf32> to vector<8x128xf32>
    %17 = arith.addf %13, %16 : vector<8x128xf32>
    %18 = arith.truncf %17 : vector<8x128xf32> to vector<8x128xbf16>
    %c0_14 = arith.constant 0 : index
    %c0_15 = arith.constant 0 : index
    %c0_16 = arith.constant 0 : index
    %19 = vector.load %arg5[%c0_14, %c0_15, %c0_16] : memref<1x128x128xbf16, #tpu.memory_space<vmem>>, vector<1x128x128xbf16>
    %20 = vector.shape_cast %19 : vector<1x128x128xbf16> to vector<128x128xbf16>
    %cst_17 = arith.constant dense<0.000000e+00> : vector<8x128xf32>
    %21 = tpu.matmul %18, %20, %cst_17 {dimension_numbers = #tpu.dot_dimension_numbers<[1], [0], [0], [1], [0, 0, 1, 1], [], []>} : vector<8x128xbf16>, vector<128x128xbf16>, vector<8x128xf32> -> vector<8x128xf32>
    %c0_18 = arith.constant 0 : index
    %c0_19 = arith.constant 0 : index
    %c0_20 = arith.constant 0 : index
    %22 = vector.load %arg6[%c0_18, %c0_19, %c0_20] : memref<1x1x128xf32, #tpu.memory_space<vmem>>, vector<1x1x128xf32>
    %23 = vector.shape_cast %22 : vector<1x1x128xf32> to vector<1x128xf32>
    %24 = vector.broadcast %23 : vector<1x128xf32> to vector<8x128xf32>
    %25 = arith.addf %21, %24 : vector<8x128xf32>
    %26 = arith.truncf %25 : vector<8x128xf32> to vector<8x128xbf16>
    %c0_21 = arith.constant 0 : index
    %c0_22 = arith.constant 0 : index
    %c0_23 = arith.constant 0 : index
    %27 = vector.load %arg8[%c0_21, %c0_22, %c0_23] : memref<1x8x128xbf16, #tpu.memory_space<vmem>>, vector<1x8x128xbf16>
    %28 = vector.shape_cast %27 : vector<1x8x128xbf16> to vector<8x128xbf16>
    %29 = vector.shape_cast %26 : vector<8x128xbf16> to vector<1x8x128xbf16>
    tpu.vector_store %arg8[%c0_21, %c0_22, %c0_23], %29 {strides = array<i32>} : memref<1x8x128xbf16, #tpu.memory_space<vmem>>, vector<1x8x128xbf16>,
    return
  }
  func.func @transform_0(%arg0: i32, %arg1: i32) -> (i32, i32, i32, i32) {
    %c0_i32 = arith.constant 0 : i32
    %c0_i32_0 = arith.constant 0 : i32
    %c0_i32_1 = arith.constant 0 : i32
    return %arg1, %arg0, %c0_i32, %c0_i32_0 : i32, i32, i32, i32
  }
  func.func @transform_1(%arg0: i32, %arg1: i32) -> (i32, i32, i32) {
    %c0_i32 = arith.constant 0 : i32
    %c0_i32_0 = arith.constant 0 : i32
    %c0_i32_1 = arith.constant 0 : i32
    return %arg0, %c0_i32, %c0_i32_0 : i32, i32, i32
  }
  func.func @transform_2(%arg0: i32, %arg1: i32) -> (i32, i32, i32) {
    %c0_i32 = arith.constant 0 : i32
    %c0_i32_0 = arith.constant 0 : i32
    %c0_i32_1 = arith.constant 0 : i32
    return %arg0, %c0_i32, %c0_i32_0 : i32, i32, i32
  }
  func.func @transform_3(%arg0: i32, %arg1: i32) -> (i32, i32, i32) {
    %c0_i32 = arith.constant 0 : i32
    %c0_i32_0 = arith.constant 0 : i32
    %c0_i32_1 = arith.constant 0 : i32
    return %arg0, %c0_i32, %c0_i32_0 : i32, i32, i32
  }
  func.func @transform_4(%arg0: i32, %arg1: i32) -> (i32, i32, i32) {
    %c0_i32 = arith.constant 0 : i32
    %c0_i32_0 = arith.constant 0 : i32
    %c0_i32_1 = arith.constant 0 : i32
    return %arg0, %c0_i32, %c0_i32_0 : i32, i32, i32
  }
  func.func @transform_5(%arg0: i32, %arg1: i32) -> (i32, i32, i32) {
    %c0_i32 = arith.constant 0 : i32
    %c0_i32_0 = arith.constant 0 : i32
    return %arg0, %arg1, %c0_i32 : i32, i32, i32
  }
  func.func @transform_6(%arg0: i32, %arg1: i32) -> (i32, i32, i32) {
    %c0_i32 = arith.constant 0 : i32
    %c0_i32_0 = arith.constant 0 : i32
    return %arg0, %arg1, %c0_i32 : i32, i32, i32
  }
}

</mosaic_0001>

<llo_original>
// kernel: tpu_custom_call.1
$region0: #{tpu_custom_call.1}
  #allocation0 [shape = 'u32[]', space=smem, size = 0x4, offset = 0x4, fixed_abs, tag = 'smem constant byte address 0x4 - core index']
  #allocation1 [shape = 'u32[144,128]{1,0:T(1,128)}', space=vmem, size = 0x12000, scoped, tag = 'internal scratch']
  %s0 = inlined_call_operand.hbm [shape: bf16[8,6,8,256], index: 0, kind: input, shape index: {}]
  %s1 = inlined_call_operand.hbm [shape: bf16[6,256,128], index: 1, kind: input, shape index: {}]
  %s2 = inlined_call_operand.vmem [shape: f32[6,1,128], index: 2, kind: input, shape index: {}]
  %s3 = inlined_call_operand.hbm [shape: bf16[6,128,128], index: 3, kind: input, shape index: {}]
  %s4 = inlined_call_operand.vmem [shape: f32[6,1,128], index: 4, kind: input, shape index: {}]
  %s5 = inlined_call_operand.hbm [shape: bf16[6,8,256], index: 5, kind: output, shape index: {0}]
  %s6 = inlined_call_operand.hbm [shape: bf16[6,8,128], index: 6, kind: output, shape index: {1}]
  %7 = xla_tuple %s5, %s6
  %s8 = sld [smem:[#allocation0]]
  $region73: #{tpu_custom_call.1} parent=0
    _
  %s10 = ssub.s32 1, %s8
  %s11 = scalar_select 0, %s10, %s8
  $region1: #{tpu_custom_call.1} parent=0
    #allocation2 [shape = 'u8[65536]{0}', space=vmem, size = 0x10000, scoped, tag = 'input window, operand 0']
    #allocation3 [shape = 's32[2]{0}', space=sflag, size = 0x8, scoped, tag = 'scoped memory for tpu_custom_call.1']
    #allocation4 [shape = 's32[2]{0}', space=sflag, size = 0x8, scoped, tag = 'scoped memory for tpu_custom_call.1']
    #allocation5 [shape = 'u8[131072]{0}', space=vmem, size = 0x20000, scoped, tag = 'input window, operand 1']
    #allocation6 [shape = 's32[2]{0}', space=sflag, size = 0x8, scoped, tag = 'scoped memory for tpu_custom_call.1']
    #allocation7 [shape = 'u8[65536]{0}', space=vmem, size = 0x10000, scoped, tag = 'input window, operand 3']
    #allocation8 [shape = 'u8[8192]{0}', space=vmem, size = 0x2000, scoped, tag = 'output window, operand 0']
    #allocation9 [shape = 'u8[4096]{0}', space=vmem, size = 0x1000, scoped, tag = 'output window, operand 1']
    #allocation10 [shape = 's32[2]{0}', space=sflag, size = 0x8, scoped, tag = 'scoped memory for tpu_custom_call.1']
    %12 = vsyncpa [#allocation3], 0
    %s13 = scalar_lea.sflag [#allocation3], 1
    %14 = vsyncpa %s13, 0
    %15 = vsyncpa [#allocation6], 0
    %s16 = scalar_lea.sflag [#allocation6], 1
    %17 = vsyncpa %s16, 0
    %18 = vsyncpa [#allocation4], 0
    %s19 = scalar_lea.sflag [#allocation4], 1
    %20 = vsyncpa %s19, 0
    %21 = vsyncpa [#allocation10], 0
    %s22 = scalar_lea.sflag [#allocation10], 1
    %23 = vsyncpa %s22, 0
    loop: start=0, step=1, limit=8
    $region2: #{tpu_custom_call.1} parent=1 // loop_pre_header
      _
    $region3: #{tpu_custom_call.1} parent=1 // loop_header
      %s25 = sphi 0, %s29
      %p26 = scmp.ge.s32.totalorder %s25, 8
      %s32 = sphi 0, %s44
      %s33 = sphi 0, %s40
      %s34 = sphi 0, %s32
      %s35 = sphi 0, %s33
      %s36 = sphi 0, %s34
      %s37 = sphi 0, %s35
      %s49 = sphi 0, %s51
      %s52 = sphi 0, %s49
      %s53 = sphi 0, %s52
      %s69 = sphi 0, %s53
      %s75 = sphi 0, %s77
      %s78 = sphi 0, %s75
      %s79 = sphi 0, %s78
      %s95 = sphi 0, %s79
      %s101 = sphi 0, %s103
      %s104 = sphi 0, %s101
      %s105 = sphi 0, %s104
      %s121 = sphi 0, %s105
      %s127 = sphi 0, %s129
      %s130 = sphi 0, %s127
      %s131 = sphi 0, %s130
      %s147 = sphi 0, %s131
      %s153 = sphi 0, %s155
      %s156 = sphi 0, %s153
      %s157 = sphi 0, %s156
      %s173 = sphi 0, %s157
      %s181 = sphi 0, %s183
      %s184 = sphi 0, %s181
      %s185 = sphi 0, %s184
      %s201 = sphi 0, %s185
      %s209 = sphi 0, %s211
      %s212 = sphi 0, %s209
      %s213 = sphi 0, %s212
      %s229 = sphi 0, %s213
    $region4: #{tpu_custom_call.1} parent=1 // loop_header_branch
      %28 = sbr.rel (%p26) target = $region8
    $region5: #{tpu_custom_call.1} parent=1 // loop_body
      %s30 = ssub.s32 %s25, 1
      %s31 = ssub.s32 %s25, 2
      %s38 = sadd.s32 1, %s33
      %p39 = scmp.ge.s32.totalorder %s38, 1
      %s40 = scalar_select %p39, 0, %s38
      %s41 = sadd.s32 1, %s32
      %s42 = scalar_select %p39, %s41, %s32
      %p43 = scmp.ge.s32.totalorder %s42, 6
      %s44 = scalar_select %p43, 0, %s42
      %s45 = ssub.s32 %s33, %s40
      %s46 = ssub.s32 %s32, %s44
      %s47 = sor.u32 %s45, %s46
      %p48 = scmp.eq.s32.totalorder %s47, 0
      %s50 = sadd.s32 %s49, 1
      %s51 = scalar_select %p48, %s49, %s50
      %p54 = pneg %p48
      %p55 = scmp.eq.s32.totalorder %s25, 5
      %p56 = por %p54, %p55
      %p57 = scmp.ne.s32.totalorder %s49, %s52
      %p58 = scmp.eq.s32.totalorder %s25, 0
      %p59 = por %p57, %p58
      %p60 = scmp.ne.s32.totalorder %s49, %s52
      %p61 = scmp.eq.s32.totalorder %s30, 5
      %p62 = por %p60, %p61
      %p63 = scmp.ne.s32.totalorder %s52, %s53
      %p64 = scmp.eq.s32.totalorder %s30, 0
      %p65 = por %p63, %p64
      %p66 = scmp.ne.s32.totalorder %s52, %s53
      %p67 = scmp.eq.s32.totalorder %s31, 5
      %p68 = por %p66, %p67
      %p70 = scmp.ne.s32.totalorder %s53, %s69
      %p71 = scmp.eq.s32.totalorder %s31, 0
      %p72 = por %p70, %p71
      %s73 = ssub.s32 %s32, %s44
      %p74 = scmp.eq.s32.totalorder %s73, 0
      %s76 = sadd.s32 %s75, 1
      %s77 = scalar_select %p74, %s75, %s76
      %p80 = pneg %p74
      %p81 = scmp.eq.s32.totalorder %s25, 5
      %p82 = por %p80, %p81
      %p83 = scmp.ne.s32.totalorder %s75, %s78
      %p84 = scmp.eq.s32.totalorder %s25, 0
      %p85 = por %p83, %p84
      %p86 = scmp.ne.s32.totalorder %s75, %s78
      %p87 = scmp.eq.s32.totalorder %s30, 5
      %p88 = por %p86, %p87
      %p89 = scmp.ne.s32.totalorder %s78, %s79
      %p90 = scmp.eq.s32.totalorder %s30, 0
      %p91 = por %p89, %p90
      %p92 = scmp.ne.s32.totalorder %s78, %s79
      %p93 = scmp.eq.s32.totalorder %s31, 5
      %p94 = por %p92, %p93
      %p96 = scmp.ne.s32.totalorder %s79, %s95
      %p97 = scmp.eq.s32.totalorder %s31, 0
      %p98 = por %p96, %p97
      %s99 = ssub.s32 %s32, %s44
      %p100 = scmp.eq.s32.totalorder %s99, 0
      %s102 = sadd.s32 %s101, 1
      %s103 = scalar_select %p100, %s101, %s102
      %p106 = pneg %p100
      %p107 = scmp.eq.s32.totalorder %s25, 5
      %p108 = por %p106, %p107
      %p109 = scmp.ne.s32.totalorder %s101, %s104
      %p110 = scmp.eq.s32.totalorder %s25, 0
      %p111 = por %p109, %p110
      %p112 = scmp.ne.s32.totalorder %s101, %s104
      %p113 = scmp.eq.s32.totalorder %s30, 5
      %p114 = por %p112, %p113
      %p115 = scmp.ne.s32.totalorder %s104, %s105
      %p116 = scmp.eq.s32.totalorder %s30, 0
      %p117 = por %p115, %p116
      %p118 = scmp.ne.s32.totalorder %s104, %s105
      %p119 = scmp.eq.s32.totalorder %s31, 5
      %p120 = por %p118, %p119
      %p122 = scmp.ne.s32.totalorder %s105, %s121
      %p123 = scmp.eq.s32.totalorder %s31, 0
      %p124 = por %p122, %p123
      %s125 = ssub.s32 %s32, %s44
      %p126 = scmp.eq.s32.totalorder %s125, 0
      %s128 = sadd.s32 %s127, 1
      %s129 = scalar_select %p126, %s127, %s128
      %p132 = pneg %p126
      %p133 = scmp.eq.s32.totalorder %s25, 5
      %p134 = por %p132, %p133
      %p135 = scmp.ne.s32.totalorder %s127, %s130
      %p136 = scmp.eq.s32.totalorder %s25, 0
      %p137 = por %p135, %p136
      %p138 = scmp.ne.s32.totalorder %s127, %s130
      %p139 = scmp.eq.s32.totalorder %s30, 5
      %p140 = por %p138, %p139
      %p141 = scmp.ne.s32.totalorder %s130, %s131
      %p142 = scmp.eq.s32.totalorder %s30, 0
      %p143 = por %p141, %p142
      %p144 = scmp.ne.s32.totalorder %s130, %s131
      %p145 = scmp.eq.s32.totalorder %s31, 5
      %p146 = por %p144, %p145
      %p148 = scmp.ne.s32.totalorder %s131, %s147
      %p149 = scmp.eq.s32.totalorder %s31, 0
      %p150 = por %p148, %p149
      %s151 = ssub.s32 %s32, %s44
      %p152 = scmp.eq.s32.totalorder %s151, 0
      %s154 = sadd.s32 %s153, 1
      %s155 = scalar_select %p152, %s153, %s154
      %p158 = pneg %p152
      %p159 = scmp.eq.s32.totalorder %s25, 5
      %p160 = por %p158, %p159
      %p161 = scmp.ne.s32.totalorder %s153, %s156
      %p162 = scmp.eq.s32.totalorder %s25, 0
      %p163 = por %p161, %p162
      %p164 = scmp.ne.s32.totalorder %s153, %s156
      %p165 = scmp.eq.s32.totalorder %s30, 5
      %p166 = por %p164, %p165
      %p167 = scmp.ne.s32.totalorder %s156, %s157
      %p168 = scmp.eq.s32.totalorder %s30, 0
      %p169 = por %p167, %p168
      %p170 = scmp.ne.s32.totalorder %s156, %s157
      %p171 = scmp.eq.s32.totalorder %s31, 5
      %p172 = por %p170, %p171
      %p174 = scmp.ne.s32.totalorder %s157, %s173
      %p175 = scmp.eq.s32.totalorder %s31, 0
      %p176 = por %p174, %p175
      %s177 = ssub.s32 %s32, %s44
      %s178 = ssub.s32 %s33, %s40
      %s179 = sor.u32 %s177, %s178
      %p180 = scmp.eq.s32.totalorder %s179, 0
      %s182 = sadd.s32 %s181, 1
      %s183 = scalar_select %p180, %s181, %s182
      %p186 = pneg %p180
      %p187 = scmp.eq.s32.totalorder %s25, 5
      %p188 = por %p186, %p187
      %p189 = scmp.ne.s32.totalorder %s181, %s184
      %p190 = scmp.eq.s32.totalorder %s25, 0
      %p191 = por %p189, %p190
      %p192 = scmp.ne.s32.totalorder %s181, %s184
      %p193 = scmp.eq.s32.totalorder %s30, 5
      %p194 = por %p192, %p193
      %p195 = scmp.ne.s32.totalorder %s184, %s185
      %p196 = scmp.eq.s32.totalorder %s30, 0
      %p197 = por %p195, %p196
      %p198 = scmp.ne.s32.totalorder %s184, %s185
      %p199 = scmp.eq.s32.totalorder %s31, 5
      %p200 = por %p198, %p199
      %p202 = scmp.ne.s32.totalorder %s185, %s201
      %p203 = scmp.eq.s32.totalorder %s31, 0
      %p204 = por %p202, %p203
      %s205 = ssub.s32 %s32, %s44
      %s206 = ssub.s32 %s33, %s40
      %s207 = sor.u32 %s205, %s206
      %p208 = scmp.eq.s32.totalorder %s207, 0
      %s210 = sadd.s32 %s209, 1
      %s211 = scalar_select %p208, %s209, %s210
      %p214 = pneg %p208
      %p215 = scmp.eq.s32.totalorder %s25, 5
      %p216 = por %p214, %p215
      %p217 = scmp.ne.s32.totalorder %s209, %s212
      %p218 = scmp.eq.s32.totalorder %s25, 0
      %p219 = por %p217, %p218
      %p220 = scmp.ne.s32.totalorder %s209, %s212
      %p221 = scmp.eq.s32.totalorder %s30, 5
      %p222 = por %p220, %p221
      %p223 = scmp.ne.s32.totalorder %s212, %s213
      %p224 = scmp.eq.s32.totalorder %s30, 0
      %p225 = por %p223, %p224
      %p226 = scmp.ne.s32.totalorder %s212, %s213
      %p227 = scmp.eq.s32.totalorder %s31, 5
      %p228 = por %p226, %p227
      %p230 = scmp.ne.s32.totalorder %s213, %s229
      %p231 = scmp.eq.s32.totalorder %s31, 0
      %p232 = por %p230, %p231
      %p233 = scmp.le.s32.totalorder 1, %s25
      %p234 = scmp.lt.s32.totalorder %s25, 7
      %p235 = pnand %p233, %p234
      %p236 = pneg %p235
      // Predicated region
      $region9: #{tpu_custom_call.1} parent=5 // pred_check
        _
      $region10: #{tpu_custom_call.1} parent=5 // pred_check_branch
        %238 = sbr.rel (%p235) target = $region12
      $region11: #{tpu_custom_call.1} parent=5 // pred_region
        %s239 = ssub.s32 %s25, 1
      $region12: #{tpu_custom_call.1} parent=5 // pred_fallthru
        _
      %p240 = scmp.lt.s32.totalorder %s25, 6
      // Predicated region
      $region13: #{tpu_custom_call.1} parent=5 // pred_check
        %p241 = pneg %p240
      $region14: #{tpu_custom_call.1} parent=5 // pred_check_branch
        %243 = sbr.rel (%p241) target = $region16
      $region15: #{tpu_custom_call.1} parent=5 // pred_region
        // Predicated region
        $region17: #{tpu_custom_call.1} parent=15 // pred_check
          %p244 = pneg %p59
        $region18: #{tpu_custom_call.1} parent=15 // pred_check_branch
          %246 = sbr.rel (%p244) target = $region20
        $region19: #{tpu_custom_call.1} parent=15 // pred_region
          %s247 = sand.u32 %s49, 1
          %s248 = scalar_lea.sflag [#allocation3], %s247
          %s249 = sand.u32 %s49, 1
          %s250 = smul.addr %s249, 64
          %s251 = scalar_lea.vmem [#allocation2], %s250
          %s252 = smul.u32 8, %s33
          %s254 = ssub.s32 1024, 1024
          %255 = vsyncadd %s248, %s254
          %s256 = smul.addr %s32, 2
          %s257 = smul.addr %s252, 12
          %s258 = sadd.s32 %s256, %s257
          %s259 = smul.addr %s258, 64
          %s260 = scalar_lea.hbm %s0, %s259
          %s261 = sshll.u32 %s251, 4
          %s262 = int_to_ptr.vmem [resolvable:$true] %s261
          %267 = dma.hbm_to_vmem [thread:$0]  %s260, 1024, %s262, %s248, 768, 128, 8
        $region20: #{tpu_custom_call.1} parent=15 // pred_fallthru
          _
        // Predicated region
        $region21: #{tpu_custom_call.1} parent=15 // pred_check
          %p268 = pneg %p85
        $region22: #{tpu_custom_call.1} parent=15 // pred_check_branch
          %270 = sbr.rel (%p268) target = $region24
        $region23: #{tpu_custom_call.1} parent=15 // pred_region
          %s271 = sand.u32 %s25, 1
          %s272 = scalar_lea.sflag [#allocation6], %s271
          %s273 = sand.u32 %s75, 1
          %s274 = smul.addr %s273, 128
          %s275 = scalar_lea.vmem [#allocation5], %s274
          %s277 = ssub.s32 2048, 2048
          %278 = vsyncadd %s272, %s277
          %s279 = smul.addr %s32, 32
          %s280 = smul.addr %s279, 64
          %s281 = scalar_lea.hbm %s1, %s280
          %s282 = sshll.u32 %s275, 4
          %s283 = int_to_ptr.vmem [resolvable:$true] %s282
          %288 = dma.hbm_to_vmem [thread:$0]  %s281, 2048, %s283, %s272, 64, 64, 4
        $region24: #{tpu_custom_call.1} parent=15 // pred_fallthru
          _
        // Predicated region
        $region25: #{tpu_custom_call.1} parent=15 // pred_check
          %p289 = pneg %p111
        $region26: #{tpu_custom_call.1} parent=15 // pred_check_branch
          %291 = sbr.rel (%p289) target = $region28
        $region27: #{tpu_custom_call.1} parent=15 // pred_region
          %p292 = scmp.lt.s32.totalorder %s32, 5
          %s293 = scalar_select %p292, %s32, 5
          %s294 = scalar_lea.vmem %s2, %s293
        $region28: #{tpu_custom_call.1} parent=15 // pred_fallthru
          _
        // Predicated region
        $region29: #{tpu_custom_call.1} parent=15 // pred_check
          %p295 = pneg %p137
        $region30: #{tpu_custom_call.1} parent=15 // pred_check_branch
          %297 = sbr.rel (%p295) target = $region32
        $region31: #{tpu_custom_call.1} parent=15 // pred_region
          %s298 = sand.u32 %s25, 1
          %s299 = scalar_lea.sflag [#allocation6], %s298
          %s300 = sand.u32 %s127, 1
          %s301 = smul.addr %s300, 64
          %s302 = scalar_lea.vmem [#allocation7], %s301
          %s304 = ssub.s32 1024, 1024
          %305 = vsyncadd %s299, %s304
          %s306 = smul.addr %s32, 16
          %s307 = smul.addr %s306, 64
          %s308 = scalar_lea.hbm %s3, %s307
          %s309 = sshll.u32 %s302, 4
          %s310 = int_to_ptr.vmem [resolvable:$true] %s309
          %315 = dma.hbm_to_vmem [thread:$0]  %s308, 1024, %s310, %s299, 64, 64, 4
        $region32: #{tpu_custom_call.1} parent=15 // pred_fallthru
          _
        // Predicated region
        $region33: #{tpu_custom_call.1} parent=15 // pred_check
          %p316 = pneg %p163
        $region34: #{tpu_custom_call.1} parent=15 // pred_check_branch
          %318 = sbr.rel (%p316) target = $region36
        $region35: #{tpu_custom_call.1} parent=15 // pred_region
          %p319 = scmp.lt.s32.totalorder %s32, 5
          %s320 = scalar_select %p319, %s32, 5
          %s321 = scalar_lea.vmem %s4, %s320
        $region36: #{tpu_custom_call.1} parent=15 // pred_fallthru
          _
      $region16: #{tpu_custom_call.1} parent=5 // pred_fallthru
        _
      %p322 = scmp.le.s32.totalorder 1, %s25
      %p323 = scmp.lt.s32.totalorder %s25, 7
      %p324 = pnand %p322, %p323
      %p325 = pneg %p324
      // Predicated region
      $region37: #{tpu_custom_call.1} parent=5 // pred_check
        _
      $region38: #{tpu_custom_call.1} parent=5 // pred_check_branch
        %327 = sbr.rel (%p324) target = $region40
      $region39: #{tpu_custom_call.1} parent=5 // pred_region
        %s328 = ssub.s32 %s25, 1
        %s329 = sand.u32 %s52, 1
        %s330 = scalar_lea.sflag [#allocation3], %s329
        %s331 = sand.u32 %s52, 1
        %s332 = smul.addr %s331, 64
        %s333 = scalar_lea.vmem [#allocation2], %s332
        // Predicated region
        $region41: #{tpu_custom_call.1} parent=39 // pred_check
          %p334 = pneg %p65
        $region42: #{tpu_custom_call.1} parent=39 // pred_check_branch
          %336 = sbr.rel (%p334) target = $region44
        $region43: #{tpu_custom_call.1} parent=39 // pred_region
          %337 = dma.done %s330, 1024
        $region44: #{tpu_custom_call.1} parent=39 // pred_fallthru
          _
        %s338 = sand.u32 %s30, 1
        %s339 = scalar_lea.sflag [#allocation6], %s338
        %s340 = sand.u32 %s78, 1
        %s341 = smul.addr %s340, 128
        %s342 = scalar_lea.vmem [#allocation5], %s341
        // Predicated region
        $region45: #{tpu_custom_call.1} parent=39 // pred_check
          %p343 = pneg %p91
        $region46: #{tpu_custom_call.1} parent=39 // pred_check_branch
          %345 = sbr.rel (%p343) target = $region48
        $region47: #{tpu_custom_call.1} parent=39 // pred_region
          %346 = dma.done %s339, 2048
        $region48: #{tpu_custom_call.1} parent=39 // pred_fallthru
          _
        %s347 = sand.u32 %s30, 1
        %s348 = scalar_lea.sflag [#allocation6], %s347
        %s349 = sand.u32 %s130, 1
        %s350 = smul.addr %s349, 64
        %s351 = scalar_lea.vmem [#allocation7], %s350
        // Predicated region
        $region49: #{tpu_custom_call.1} parent=39 // pred_check
          %p352 = pneg %p143
        $region50: #{tpu_custom_call.1} parent=39 // pred_check_branch
          %354 = sbr.rel (%p352) target = $region52
        $region51: #{tpu_custom_call.1} parent=39 // pred_region
          %355 = dma.done %s348, 1024
        $region52: #{tpu_custom_call.1} parent=39 // pred_fallthru
          _
        %s356 = sand.u32 %s52, 1
        %s357 = scalar_lea.sflag [#allocation3], %s356
        %s358 = sand.u32 %s52, 1
        %s359 = smul.addr %s358, 64
        %s360 = scalar_lea.vmem [#allocation2], %s359
        %p361 = pneg %p65
        %p362 = pneg %p62
        %s363 = sand.u32 %s30, 1
        %s364 = scalar_lea.sflag [#allocation6], %s363
        %s365 = sand.u32 %s78, 1
        %s366 = smul.addr %s365, 128
        %s367 = scalar_lea.vmem [#allocation5], %s366
        %p368 = pneg %p91
        %p369 = pneg %p88
        %p370 = scmp.lt.s32.totalorder %s34, 5
        %s371 = scalar_select %p370, %s34, 5
        %s372 = scalar_lea.vmem %s2, %s371
        %p373 = pneg %p117
        %p374 = pneg %p114
        %s375 = sand.u32 %s30, 1
        %s376 = scalar_lea.sflag [#allocation6], %s375
        %s377 = sand.u32 %s130, 1
        %s378 = smul.addr %s377, 64
        %s379 = scalar_lea.vmem [#allocation7], %s378
        %p380 = pneg %p143
        %p381 = pneg %p140
        %p382 = scmp.lt.s32.totalorder %s34, 5
        %s383 = scalar_select %p382, %s34, 5
        %s384 = scalar_lea.vmem %s4, %s383
        %p385 = pneg %p169
        %p386 = pneg %p166
        %p387 = pneg %p197
        %p388 = pneg %p194
        %s389 = sand.u32 %s184, 1
        %s390 = scalar_lea.sflag [#allocation4], %s389
        %s391 = sand.u32 %s184, 1
        %s392 = smul.addr %s391, 8
        %s393 = scalar_lea.vmem [#allocation8], %s392
        %p394 = pneg %p225
        %p395 = pneg %p222
        %s396 = sand.u32 %s212, 1
        %s397 = scalar_lea.sflag [#allocation10], %s396
        %s398 = sand.u32 %s212, 1
        %s399 = smul.addr %s398, 4
        %s400 = scalar_lea.vmem [#allocation9], %s399
        %s401 = smul.u32 8, %s35
        %p402 = scmp.lt.s32.totalorder %s34, 5
        %s403 = scalar_select %p402, %s34, 5
        %s404 = scalar_lea.vmem %s2, %s403
        %p405 = scmp.lt.s32.totalorder %s34, 5
        %s406 = scalar_select %p405, %s34, 5
        %s407 = scalar_lea.vmem %s4, %s406
        %v409 = vld [vmem:[%s333] sm:$0xff]
        %v410 = vld [vmem:[%s333 + $0x8] sm:$0xff]
        %v411 = vld [vmem:[%s333 + $0x10] sm:$0xff]
        %v412 = vld [vmem:[%s333 + $0x18] sm:$0xff]
        %v413 = vld [vmem:[%s333 + $0x20] sm:$0xff]
        %v414 = vld [vmem:[%s333 + $0x28] sm:$0xff]
        %v415 = vld [vmem:[%s333 + $0x30] sm:$0xff]
        %v416 = vld [vmem:[%s333 + $0x38] sm:$0xff]
        %v417 = vunpack.c.l.bf16 %v409
        %v418 = vunpack.c.h.bf16 %v409
        %v419 = vunpack.c.l.bf16 %v410
        %v420 = vunpack.c.h.bf16 %v410
        %v421 = vunpack.c.l.bf16 %v411
        %v422 = vunpack.c.h.bf16 %v411
        %v423 = vunpack.c.l.bf16 %v412
        %v424 = vunpack.c.h.bf16 %v412
        %v425 = vunpack.c.l.bf16 %v413
        %v426 = vunpack.c.h.bf16 %v413
        %v427 = vunpack.c.l.bf16 %v414
        %v428 = vunpack.c.h.bf16 %v414
        %v429 = vunpack.c.l.bf16 %v415
        %v430 = vunpack.c.h.bf16 %v415
        %v431 = vunpack.c.l.bf16 %v416
        %v432 = vunpack.c.h.bf16 %v416
        %v433 = vrot.slane %v417, 4
        %v434 = vadd.f32 %v417, %v433
        %v435 = vrot.slane %v434, 2
        %v436 = vadd.f32 %v434, %v435
        %v437 = vrot.slane %v436, 1
        %v438 = vadd.f32 %v436, %v437
        %v439 = vrot.slane %v418, 4
        %v440 = vadd.f32 %v418, %v439
        %v441 = vrot.slane %v440, 2
        %v442 = vadd.f32 %v440, %v441
        %v443 = vrot.slane %v442, 1
        %v444 = vadd.f32 %v442, %v443
        %v445 = vrot.slane %v419, 4
        %v446 = vadd.f32 %v419, %v445
        %v447 = vrot.slane %v446, 2
        %v448 = vadd.f32 %v446, %v447
        %v449 = vrot.slane %v448, 1
        %v450 = vadd.f32 %v448, %v449
        %v451 = vrot.slane %v420, 4
        %v452 = vadd.f32 %v420, %v451
        %v453 = vrot.slane %v452, 2
        %v454 = vadd.f32 %v452, %v453
        %v455 = vrot.slane %v454, 1
        %v456 = vadd.f32 %v454, %v455
        %v457 = vrot.slane %v421, 4
        %v458 = vadd.f32 %v421, %v457
        %v459 = vrot.slane %v458, 2
        %v460 = vadd.f32 %v458, %v459
        %v461 = vrot.slane %v460, 1
        %v462 = vadd.f32 %v460, %v461
        %v463 = vrot.slane %v422, 4
        %v464 = vadd.f32 %v422, %v463
        %v465 = vrot.slane %v464, 2
        %v466 = vadd.f32 %v464, %v465
        %v467 = vrot.slane %v466, 1
        %v468 = vadd.f32 %v466, %v467
        %v469 = vrot.slane %v423, 4
        %v470 = vadd.f32 %v423, %v469
        %v471 = vrot.slane %v470, 2
        %v472 = vadd.f32 %v470, %v471
        %v473 = vrot.slane %v472, 1
        %v474 = vadd.f32 %v472, %v473
        %v475 = vrot.slane %v424, 4
        %v476 = vadd.f32 %v424, %v475
        %v477 = vrot.slane %v476, 2
        %v478 = vadd.f32 %v476, %v477
        %v479 = vrot.slane %v478, 1
        %v480 = vadd.f32 %v478, %v479
        %v481 = vrot.slane %v425, 4
        %v482 = vadd.f32 %v425, %v481
        %v483 = vrot.slane %v482, 2
        %v484 = vadd.f32 %v482, %v483
        %v485 = vrot.slane %v484, 1
        %v486 = vadd.f32 %v484, %v485
        %v487 = vrot.slane %v426, 4
        %v488 = vadd.f32 %v426, %v487
        %v489 = vrot.slane %v488, 2
        %v490 = vadd.f32 %v488, %v489
        %v491 = vrot.slane %v490, 1
        %v492 = vadd.f32 %v490, %v491
        %v493 = vrot.slane %v427, 4
        %v494 = vadd.f32 %v427, %v493
        %v495 = vrot.slane %v494, 2
        %v496 = vadd.f32 %v494, %v495
        %v497 = vrot.slane %v496, 1
        %v498 = vadd.f32 %v496, %v497
        %v499 = vrot.slane %v428, 4
        %v500 = vadd.f32 %v428, %v499
        %v501 = vrot.slane %v500, 2
        %v502 = vadd.f32 %v500, %v501
        %v503 = vrot.slane %v502, 1
        %v504 = vadd.f32 %v502, %v503
        %v505 = vrot.slane %v429, 4
        %v506 = vadd.f32 %v429, %v505
        %v507 = vrot.slane %v506, 2
        %v508 = vadd.f32 %v506, %v507
        %v509 = vrot.slane %v508, 1
        %v510 = vadd.f32 %v508, %v509
        %v511 = vrot.slane %v430, 4
        %v512 = vadd.f32 %v430, %v511
        %v513 = vrot.slane %v512, 2
        %v514 = vadd.f32 %v512, %v513
        %v515 = vrot.slane %v514, 1
        %v516 = vadd.f32 %v514, %v515
        %v517 = vrot.slane %v431, 4
        %v518 = vadd.f32 %v431, %v517
        %v519 = vrot.slane %v518, 2
        %v520 = vadd.f32 %v518, %v519
        %v521 = vrot.slane %v520, 1
        %v522 = vadd.f32 %v520, %v521
        %v523 = vrot.slane %v432, 4
        %v524 = vadd.f32 %v432, %v523
        %v525 = vrot.slane %v524, 2
        %v526 = vadd.f32 %v524, %v525
        %v527 = vrot.slane %v526, 1
        %v528 = vadd.f32 %v526, %v527
        %v529 = vmul.f32 %v438, 0.125
        %v530 = vmul.f32 %v444, 0.125
        %v531 = vmul.f32 %v450, 0.125
        %v532 = vmul.f32 %v456, 0.125
        %v533 = vmul.f32 %v462, 0.125
        %v534 = vmul.f32 %v468, 0.125
        %v535 = vmul.f32 %v474, 0.125
        %v536 = vmul.f32 %v480, 0.125
        %v537 = vmul.f32 %v486, 0.125
        %v538 = vmul.f32 %v492, 0.125
        %v539 = vmul.f32 %v498, 0.125
        %v540 = vmul.f32 %v504, 0.125
        %v541 = vmul.f32 %v510, 0.125
        %v542 = vmul.f32 %v516, 0.125
        %v543 = vmul.f32 %v522, 0.125
        %v544 = vmul.f32 %v528, 0.125
        %v545 = vpack.c.bf16 %v529, %v529
        %v546 = vpack.c.bf16 %v530, %v530
        %v547 = vpack.c.bf16 %v531, %v531
        %v548 = vpack.c.bf16 %v532, %v532
        %v549 = vpack.c.bf16 %v533, %v533
        %v550 = vpack.c.bf16 %v534, %v534
        %v551 = vpack.c.bf16 %v535, %v535
        %v552 = vpack.c.bf16 %v536, %v536
        %v553 = vpack.c.bf16 %v537, %v537
        %v554 = vpack.c.bf16 %v538, %v538
        %v555 = vpack.c.bf16 %v539, %v539
        %v556 = vpack.c.bf16 %v540, %v540
        %v557 = vpack.c.bf16 %v541, %v541
        %v558 = vpack.c.bf16 %v542, %v542
        %v559 = vpack.c.bf16 %v543, %v543
        %v560 = vpack.c.bf16 %v544, %v544
        %v577 = vunpack.c.l.b16 %v545
        %v578 = vunpack.c.l.b16 %v546
        %v579 = vunpack.c.l.b16 %v547
        %v580 = vunpack.c.l.b16 %v548
        %v581 = vunpack.c.l.b16 %v549
        %v582 = vunpack.c.l.b16 %v550
        %v583 = vunpack.c.l.b16 %v551
        %v584 = vunpack.c.l.b16 %v552
        %v585 = vunpack.c.l.b16 %v553
        %v586 = vunpack.c.l.b16 %v554
        %v587 = vunpack.c.l.b16 %v555
        %v588 = vunpack.c.l.b16 %v556
        %v589 = vunpack.c.l.b16 %v557
        %v590 = vunpack.c.l.b16 %v558
        %v591 = vunpack.c.l.b16 %v559
        %v592 = vunpack.c.l.b16 %v560
        %v593 = vpack.c.b16 %v578, %v577
        %v594 = vpack.c.b16 %v580, %v579
        %v595 = vpack.c.b16 %v582, %v581
        %v596 = vpack.c.b16 %v584, %v583
        %v597 = vpack.c.b16 %v586, %v585
        %v598 = vpack.c.b16 %v588, %v587
        %v599 = vpack.c.b16 %v590, %v589
        %v600 = vpack.c.b16 %v592, %v591
        %v601 = vunpack.c.l.b16 %v593
        %v602 = vunpack.c.h.b16 %v593
        %v603 = vunpack.c.l.b16 %v594
        %v604 = vunpack.c.h.b16 %v594
        %v605 = vunpack.c.l.b16 %v595
        %v606 = vunpack.c.h.b16 %v595
        %v607 = vunpack.c.l.b16 %v596
        %v608 = vunpack.c.h.b16 %v596
        %v609 = vunpack.c.l.b16 %v597
        %v610 = vunpack.c.h.b16 %v597
        %v611 = vunpack.c.l.b16 %v598
        %v612 = vunpack.c.h.b16 %v598
        %v613 = vunpack.c.l.b16 %v599
        %v614 = vunpack.c.h.b16 %v599
        %v615 = vunpack.c.l.b16 %v600
        %v616 = vunpack.c.h.b16 %v600
        %vm617 = vcmask 1041409
        %v618 = vsel %vm617, %v603, %v601
        %vm619 = vcmask 1042434
        %v620 = vsel %vm619, %v605, %v618
        %vm621 = vcmask 1043459
        %v622 = vsel %vm621, %v607, %v620
        %vm623 = vcmask 1044484
        %v624 = vsel %vm623, %v609, %v622
        %vm625 = vcmask 1045509
        %v626 = vsel %vm625, %v611, %v624
        %vm627 = vcmask 1046534
        %v628 = vsel %vm627, %v613, %v626
        %vm629 = vcmask 1047559
        %v630 = vsel %vm629, %v615, %v628
        %v631 = vsel %vm617, %v604, %v602
        %v632 = vsel %vm619, %v606, %v631
        %v633 = vsel %vm621, %v608, %v632
        %v634 = vsel %vm623, %v610, %v633
        %v635 = vsel %vm625, %v612, %v634
        %v636 = vsel %vm627, %v614, %v635
        %v637 = vsel %vm629, %v616, %v636
        %v638 = vpack.c.b16 %v637, %v630
        %640 = vst [vmem:[%s393] sm:$0xff] %v638
        %v641 = vld [vmem:[%s342] sm:$0xf]
        %v642 = vld [vmem:[%s342 + $0x4] sm:$0xf]
        %v643 = vld [vmem:[%s342 + $0x8] sm:$0xf]
        %v644 = vld [vmem:[%s342 + $0xc] sm:$0xf]
        %v645 = vld [vmem:[%s342 + $0x10] sm:$0xf]
        %v646 = vld [vmem:[%s342 + $0x14] sm:$0xf]
        %v647 = vld [vmem:[%s342 + $0x18] sm:$0xf]
        %v648 = vld [vmem:[%s342 + $0x1c] sm:$0xf]
        %v649 = vld [vmem:[%s342 + $0x20] sm:$0xf]
        %v650 = vld [vmem:[%s342 + $0x24] sm:$0xf]
        %v651 = vld [vmem:[%s342 + $0x28] sm:$0xf]
        %v652 = vld [vmem:[%s342 + $0x2c] sm:$0xf]
        %v653 = vld [vmem:[%s342 + $0x30] sm:$0xf]
        %v654 = vld [vmem:[%s342 + $0x34] sm:$0xf]
        %v655 = vld [vmem:[%s342 + $0x38] sm:$0xf]
        %v656 = vld [vmem:[%s342 + $0x3c] sm:$0xf]
        %v657 = vld [vmem:[%s342 + $0x40] sm:$0xf]
        %v658 = vld [vmem:[%s342 + $0x44] sm:$0xf]
        %v659 = vld [vmem:[%s342 + $0x48] sm:$0xf]
        %v660 = vld [vmem:[%s342 + $0x4c] sm:$0xf]
        %v661 = vld [vmem:[%s342 + $0x50] sm:$0xf]
        %v662 = vld [vmem:[%s342 + $0x54] sm:$0xf]
        %v663 = vld [vmem:[%s342 + $0x58] sm:$0xf]
        %v664 = vld [vmem:[%s342 + $0x5c] sm:$0xf]
        %v665 = vld [vmem:[%s342 + $0x60] sm:$0xf]
        %v666 = vld [vmem:[%s342 + $0x64] sm:$0xf]
        %v667 = vld [vmem:[%s342 + $0x68] sm:$0xf]
        %v668 = vld [vmem:[%s342 + $0x6c] sm:$0xf]
        %v669 = vld [vmem:[%s342 + $0x70] sm:$0xf]
        %v670 = vld [vmem:[%s342 + $0x74] sm:$0xf]
        %v671 = vld [vmem:[%s342 + $0x78] sm:$0xf]
        %v672 = vld [vmem:[%s342 + $0x7c] sm:$0xf]
        %v673 = vld [vmem:[%s404] sm:$0x1]
        %v675 = vlaneseq
        %v676 = vshrl.u32 %v675, 7
        %v677 = vsub.s32 0, %v676
        %v678 = vrot.slane %v673, %v677
        %v680 = vsel %vm617, %v579, %v577
        %v681 = vsel %vm619, %v581, %v680
        %v682 = vsel %vm621, %v583, %v681
        %v683 = vsel %vm623, %v585, %v682
        %v684 = vsel %vm625, %v587, %v683
        %v685 = vsel %vm627, %v589, %v684
        %v686 = vsel %vm629, %v591, %v685
        %v687 = vsel %vm617, %v580, %v578
        %v688 = vsel %vm619, %v582, %v687
        %v689 = vsel %vm621, %v584, %v688
        %v690 = vsel %vm623, %v586, %v689
        %v691 = vsel %vm625, %v588, %v690
        %v692 = vsel %vm627, %v590, %v691
        %v693 = vsel %vm629, %v592, %v692
        %v694 = vpack.c.b16 %v686, %v686
        %v695 = vpack.c.b16 %v693, %v693
        %v730 = vunpack.c.l.b16 %v641
        %v731 = vunpack.c.l.b16 %v642
        %v732 = vunpack.c.l.b16 %v643
        %v733 = vunpack.c.l.b16 %v644
        %v734 = vunpack.c.l.b16 %v645
        %v735 = vunpack.c.l.b16 %v646
        %v736 = vunpack.c.l.b16 %v647
        %v737 = vunpack.c.l.b16 %v648
        %v738 = vunpack.c.l.b16 %v649
        %v739 = vunpack.c.l.b16 %v650
        %v740 = vunpack.c.l.b16 %v651
        %v741 = vunpack.c.l.b16 %v652
        %v742 = vunpack.c.l.b16 %v653
        %v743 = vunpack.c.l.b16 %v654
        %v744 = vunpack.c.l.b16 %v655
        %v745 = vunpack.c.l.b16 %v656
        %v746 = vunpack.c.l.b16 %v657
        %v747 = vunpack.c.l.b16 %v658
        %v748 = vunpack.c.l.b16 %v659
        %v749 = vunpack.c.l.b16 %v660
        %v750 = vunpack.c.l.b16 %v661
        %v751 = vunpack.c.l.b16 %v662
        %v752 = vunpack.c.l.b16 %v663
        %v753 = vunpack.c.l.b16 %v664
        %v754 = vunpack.c.l.b16 %v665
        %v755 = vunpack.c.l.b16 %v666
        %v756 = vunpack.c.l.b16 %v667
        %v757 = vunpack.c.l.b16 %v668
        %v758 = vunpack.c.l.b16 %v669
        %v759 = vunpack.c.l.b16 %v670
        %v760 = vunpack.c.l.b16 %v671
        %v761 = vunpack.c.l.b16 %v672
        %v762 = vpack.c.b16 %v731, %v730
        %v763 = vpack.c.b16 %v733, %v732
        %v764 = vpack.c.b16 %v735, %v734
        %v765 = vpack.c.b16 %v737, %v736
        %v766 = vpack.c.b16 %v739, %v738
        %v767 = vpack.c.b16 %v741, %v740
        %v768 = vpack.c.b16 %v743, %v742
        %v769 = vpack.c.b16 %v745, %v744
        %v770 = vpack.c.b16 %v747, %v746
        %v771 = vpack.c.b16 %v749, %v748
        %v772 = vpack.c.b16 %v751, %v750
        %v773 = vpack.c.b16 %v753, %v752
        %v774 = vpack.c.b16 %v755, %v754
        %v775 = vpack.c.b16 %v757, %v756
        %v776 = vpack.c.b16 %v759, %v758
        %v777 = vpack.c.b16 %v761, %v760
        %794 = vmatprep.subr.bf16.mxu0 0
        %795 = vmatpush1.bf16.msra.mxu0 %v762
        %796 = vmatprep.subr.bf16.mxu0 0
        %797 = vmatpush1.bf16.msra.mxu0 %v763
        %798 = vmatprep.subr.bf16.mxu0 0
        %799 = vmatpush1.bf16.msra.mxu0 %v764
        %800 = vmatprep.subr.bf16.mxu0 0
        %801 = vmatpush1.bf16.msra.mxu0 %v765
        %802 = vmatprep.subr.bf16.mxu0 0
        %803 = vmatpush1.bf16.msra.mxu0 %v766
        %804 = vmatprep.subr.bf16.mxu0 0
        %805 = vmatpush1.bf16.msra.mxu0 %v767
        %806 = vmatprep.subr.bf16.mxu0 0
        %807 = vmatpush1.bf16.msra.mxu0 %v768
        %808 = vmatprep.subr.bf16.mxu0 0
        %809 = vmatpush1.bf16.msra.mxu0 %v769
        %810 = vmatprep.subr.bf16.mxu0 0
        %811 = vmatpush1.bf16.msra.mxu0 %v770
        %812 = vmatprep.subr.bf16.mxu0 0
        %813 = vmatpush1.bf16.msra.mxu0 %v771
        %814 = vmatprep.subr.bf16.mxu0 0
        %815 = vmatpush1.bf16.msra.mxu0 %v772
        %816 = vmatprep.subr.bf16.mxu0 0
        %817 = vmatpush1.bf16.msra.mxu0 %v773
        %818 = vmatprep.subr.bf16.mxu0 0
        %819 = vmatpush1.bf16.msra.mxu0 %v774
        %820 = vmatprep.subr.bf16.mxu0 0
        %821 = vmatpush1.bf16.msra.mxu0 %v775
        %822 = vmatprep.subr.bf16.mxu0 0
        %823 = vmatpush1.bf16.msra.mxu0 %v776
        %824 = vmatprep.subr.bf16.mxu0 0
        %825 = vmatpush1.bf16.msra.mxu0 %v777
        %826 = vmatprep.mubr.bf16.mxu0 %v695
        %827 = vmatmul.mubr.bf16.gmra.mrb[0].mxu0 %v694
        %v828 = vpop.f32.mrb[0].mxu0
        %v829 = vadd.f32 %v678, %v828
        %v830 = vpop.f32.mrb[0].mxu0
        %v831 = vpop.f32.mrb[0].mxu0
        %v832 = vpop.f32.mrb[0].mxu0
        %833 = vdwg.mxu0
        %v834 = vpack.c.bf16 %v829, %v829
        %v835 = vld [vmem:[%s351] sm:$0xf]
        %v836 = vld [vmem:[%s351 + $0x4] sm:$0xf]
        %v837 = vld [vmem:[%s351 + $0x8] sm:$0xf]
        %v838 = vld [vmem:[%s351 + $0xc] sm:$0xf]
        %v839 = vld [vmem:[%s351 + $0x10] sm:$0xf]
        %v840 = vld [vmem:[%s351 + $0x14] sm:$0xf]
        %v841 = vld [vmem:[%s351 + $0x18] sm:$0xf]
        %v842 = vld [vmem:[%s351 + $0x1c] sm:$0xf]
        %v843 = vld [vmem:[%s351 + $0x20] sm:$0xf]
        %v844 = vld [vmem:[%s351 + $0x24] sm:$0xf]
        %v845 = vld [vmem:[%s351 + $0x28] sm:$0xf]
        %v846 = vld [vmem:[%s351 + $0x2c] sm:$0xf]
        %v847 = vld [vmem:[%s351 + $0x30] sm:$0xf]
        %v848 = vld [vmem:[%s351 + $0x34] sm:$0xf]
        %v849 = vld [vmem:[%s351 + $0x38] sm:$0xf]
        %v850 = vld [vmem:[%s351 + $0x3c] sm:$0xf]
        %v851 = vld [vmem:[%s407] sm:$0x1]
        %v853 = vlaneseq
        %v854 = vshrl.u32 %v853, 7
        %v855 = vsub.s32 0, %v854
        %v856 = vrot.slane %v851, %v855
        %v874 = vunpack.c.l.b16 %v835
        %v875 = vunpack.c.l.b16 %v836
        %v876 = vunpack.c.l.b16 %v837
        %v877 = vunpack.c.l.b16 %v838
        %v878 = vunpack.c.l.b16 %v839
        %v879 = vunpack.c.l.b16 %v840
        %v880 = vunpack.c.l.b16 %v841
        %v881 = vunpack.c.l.b16 %v842
        %v882 = vunpack.c.l.b16 %v843
        %v883 = vunpack.c.l.b16 %v844
        %v884 = vunpack.c.l.b16 %v845
        %v885 = vunpack.c.l.b16 %v846
        %v886 = vunpack.c.l.b16 %v847
        %v887 = vunpack.c.l.b16 %v848
        %v888 = vunpack.c.l.b16 %v849
        %v889 = vunpack.c.l.b16 %v850
        %v890 = vpack.c.b16 %v875, %v874
        %v891 = vpack.c.b16 %v877, %v876
        %v892 = vpack.c.b16 %v879, %v878
        %v893 = vpack.c.b16 %v881, %v880
        %v894 = vpack.c.b16 %v883, %v882
        %v895 = vpack.c.b16 %v885, %v884
        %v896 = vpack.c.b16 %v887, %v886
        %v897 = vpack.c.b16 %v889, %v888
        %906 = vmatprep.subr.bf16.mxu0 0
        %907 = vmatpush1.bf16.msra.mxu0 %v890
        %908 = vmatprep.subr.bf16.mxu0 0
        %909 = vmatpush1.bf16.msra.mxu0 %v891
        %910 = vmatprep.subr.bf16.mxu0 0
        %911 = vmatpush1.bf16.msra.mxu0 %v892
        %912 = vmatprep.subr.bf16.mxu0 0
        %913 = vmatpush1.bf16.msra.mxu0 %v893
        %914 = vmatprep.subr.bf16.mxu0 0
        %915 = vmatpush1.bf16.msra.mxu0 %v894
        %916 = vmatprep.subr.bf16.mxu0 0
        %917 = vmatpush1.bf16.msra.mxu0 %v895
        %918 = vmatprep.subr.bf16.mxu0 0
        %919 = vmatpush1.bf16.msra.mxu0 %v896
        %920 = vmatprep.subr.bf16.mxu0 0
        %921 = vmatpush1.bf16.msra.mxu0 %v897
        %922 = vmatprep.subr.bf16.mxu0 0
        %923 = vmatpush1.bf16.msra.mxu0 0
        %924 = vmatprep.subr.bf16.mxu0 0
        %925 = vmatpush1.bf16.msra.mxu0 0
        %926 = vmatprep.subr.bf16.mxu0 0
        %927 = vmatpush1.bf16.msra.mxu0 0
        %928 = vmatprep.subr.bf16.mxu0 0
        %929 = vmatpush1.bf16.msra.mxu0 0
        %930 = vmatprep.subr.bf16.mxu0 0
        %931 = vmatpush1.bf16.msra.mxu0 0
        %932 = vmatprep.subr.bf16.mxu0 0
        %933 = vmatpush1.bf16.msra.mxu0 0
        %934 = vmatprep.subr.bf16.mxu0 0
        %935 = vmatpush1.bf16.msra.mxu0 0
        %936 = vmatprep.subr.bf16.mxu0 0
        %937 = vmatpush1.bf16.msra.mxu0 0
        %938 = vmatprep.mubr.bf16.mxu0 0
        %939 = vmatmul.mubr.bf16.gmra.mrb[0].mxu0 %v834
        %v940 = vpop.f32.mrb[0].mxu0
        %v941 = vadd.f32 %v856, %v940
        %v942 = vpop.f32.mrb[0].mxu0
        %v943 = vpop.f32.mrb[0].mxu0
        %v944 = vpop.f32.mrb[0].mxu0
        %945 = vdwg.mxu0
        %v946 = vpack.c.bf16 %v941, %v941
        %947 = vst [vmem:[%s400] sm:$0xf] %v946
        %s948 = sand.u32 %s184, 1
        %s949 = scalar_lea.sflag [#allocation4], %s948
        %s950 = sand.u32 %s184, 1
        %s951 = smul.addr %s950, 8
        %s952 = scalar_lea.vmem [#allocation8], %s951
        %s953 = sand.u32 %s212, 1
        %s954 = scalar_lea.sflag [#allocation10], %s953
        %s955 = sand.u32 %s212, 1
        %s956 = smul.addr %s955, 4
        %s957 = scalar_lea.vmem [#allocation9], %s956
        // Predicated region
        $region53: #{tpu_custom_call.1} parent=39 // pred_check
          %p958 = pneg %p194
        $region54: #{tpu_custom_call.1} parent=39 // pred_check_branch
          %960 = sbr.rel (%p958) target = $region56
        $region55: #{tpu_custom_call.1} parent=39 // pred_region
          %s962 = ssub.s32 128, 128
          %963 = vsyncadd %s949, %s962
          %s964 = smul.addr %s35, 2
          %s965 = smul.addr %s34, 2
          %s966 = sadd.s32 %s964, %s965
          %s967 = smul.addr %s966, 64
          %s968 = scalar_lea.hbm %s5, %s967
          %s970 = sshll.u32 %s952, 4
          %s971 = int_to_ptr.vmem [resolvable:$true] %s970
          %973 = dma.vmem_to_hbm [thread:$0]  %s971, 128, %s968, %s949
        $region56: #{tpu_custom_call.1} parent=39 // pred_fallthru
          _
        // Predicated region
        $region57: #{tpu_custom_call.1} parent=39 // pred_check
          %p974 = pneg %p222
        $region58: #{tpu_custom_call.1} parent=39 // pred_check_branch
          %976 = sbr.rel (%p974) target = $region60
        $region59: #{tpu_custom_call.1} parent=39 // pred_region
          %s978 = ssub.s32 64, 64
          %979 = vsyncadd %s954, %s978
          %s980 = sadd.s32 %s35, %s34
          %s981 = smul.addr %s980, 64
          %s982 = scalar_lea.hbm %s6, %s981
          %s984 = sshll.u32 %s957, 4
          %s985 = int_to_ptr.vmem [resolvable:$true] %s984
          %987 = dma.vmem_to_hbm [thread:$0]  %s985, 64, %s982, %s954
        $region60: #{tpu_custom_call.1} parent=39 // pred_fallthru
          _
      $region40: #{tpu_custom_call.1} parent=5 // pred_fallthru
        _
      %p988 = scmp.le.s32.totalorder 2, %s25
      // Predicated region
      $region61: #{tpu_custom_call.1} parent=5 // pred_check
        %p989 = pneg %p988
      $region62: #{tpu_custom_call.1} parent=5 // pred_check_branch
        %991 = sbr.rel (%p989) target = $region64
      $region63: #{tpu_custom_call.1} parent=5 // pred_region
        %s992 = ssub.s32 %s25, 2
        // Predicated region
        $region65: #{tpu_custom_call.1} parent=63 // pred_check
          %p993 = pneg %p200
        $region66: #{tpu_custom_call.1} parent=63 // pred_check_branch
          %995 = sbr.rel (%p993) target = $region68
        $region67: #{tpu_custom_call.1} parent=63 // pred_region
          %s996 = sand.u32 %s185, 1
          %s997 = scalar_lea.sflag [#allocation4], %s996
          %s998 = sand.u32 %s185, 1
          %s999 = smul.addr %s998, 8
          %s1000 = scalar_lea.vmem [#allocation8], %s999
          %1001 = dma.done %s997, 128
        $region68: #{tpu_custom_call.1} parent=63 // pred_fallthru
          _
        // Predicated region
        $region69: #{tpu_custom_call.1} parent=63 // pred_check
          %p1002 = pneg %p228
        $region70: #{tpu_custom_call.1} parent=63 // pred_check_branch
          %1004 = sbr.rel (%p1002) target = $region72
        $region71: #{tpu_custom_call.1} parent=63 // pred_region
          %s1005 = sand.u32 %s213, 1
          %s1006 = scalar_lea.sflag [#allocation10], %s1005
          %s1007 = sand.u32 %s213, 1
          %s1008 = smul.addr %s1007, 4
          %s1009 = scalar_lea.vmem [#allocation9], %s1008
          %1010 = dma.done %s1006, 64
        $region72: #{tpu_custom_call.1} parent=63 // pred_fallthru
          _
      $region64: #{tpu_custom_call.1} parent=5 // pred_fallthru
        _
    $region6: #{tpu_custom_call.1} parent=1 // loop_footer
      %s29 = sadd.s32 1, %s25
    $region7: #{tpu_custom_call.1} parent=1 // loop_footer_branch
      %24 = sbr.rel target = $region3
    $region8: #{tpu_custom_call.1} parent=1 // loop_exit
      _
    %1011 = vsyncpa [#allocation3], 1
    %s1012 = scalar_lea.sflag [#allocation3], 1
    %1013 = vsyncpa %s1012, 1
    %1014 = vsyncpa [#allocation6], 1
    %s1015 = scalar_lea.sflag [#allocation6], 1
    %1016 = vsyncpa %s1015, 1
    %1017 = vsyncpa [#allocation4], 1
    %s1018 = scalar_lea.sflag [#allocation4], 1
    %1019 = vsyncpa %s1018, 1
    %1020 = vsyncpa [#allocation10], 1
    %s1021 = scalar_lea.sflag [#allocation10], 1
    %1022 = vsyncpa %s1021, 1

</llo_original>
